<compile_context>
chip_gen: v6e
topology: v6e:2x2x1
jax: 0.10.0
libtpu: 0.0.40
codegen_flags: <defaults>
</compile_context>

<pallas_src>
import functools

import jax
import jax.numpy as jnp
from jax.experimental import pallas as pl
from jax.experimental.pallas import tpu as pltpu


def _round_up(v, m):
    return -(-v // m) * m


def _vnet_kernel(x_ref, g1w_ref, g1b_ref, g2w_ref, g2b_ref, g3w_ref, g3b_ref,
                 fcw_ref, fcb_ref, e_ref, out_ref, gv_ref, *, x1, M):
    """One batch tile of the packed VNet forward.

    P batch rows are packed along the lane axis, so every ref is lane-dense:
      x_ref   : [BT, P*Nout]        fp32
      g1w_ref : [P*Nout, P*20]      bf16 (block-diag)   g1b_ref : [1, P*20]  fp32
      g2w_ref : [P*20,   P*10]      bf16 (block-diag)   g2b_ref : [1, P*10]  fp32
      g3w_ref : [P*10,   P*M ]      bf16 (block-diag)   g3b_ref : [1, P*M ]  fp32
      fcw_ref : [M, P*Nout, P*Nout] bf16 (block-diag)   fcb_ref : [M, P*Nout] fp32
      e_ref   : [M, P*M, P*Nout]    fp32 one-hot gate-expansion matrices
      out_ref : [BT, P*Nout] fp32         gv_ref  : [BT, P*M]  fp32
    """
    x = x_ref[...]                              # fp32
    x_bf = x.astype(jnp.bfloat16)               # MXU input (reused by tower step 0)

    # Gating network: g3(relu(g2(relu(g1(x))))) with block-diagonal packed
    # weights; bf16 MXU, fp32 accumulation.
    g = jnp.dot(x_bf, g1w_ref[...],
                preferred_element_type=jnp.float32) + g1b_ref[...]
    g = jnp.maximum(g, 0.0)
    g = jnp.dot(g.astype(jnp.bfloat16), g2w_ref[...],
                preferred_element_type=jnp.float32) + g2b_ref[...]
    g = jnp.maximum(g, 0.0)
    z = jnp.dot(g.astype(jnp.bfloat16), g3w_ref[...],
                preferred_element_type=jnp.float32) + g3b_ref[...]

    # logis(z, x1) = 1 / (1 + exp(-k*(z - x1))), k = 10.  Exact fp32 sigmoid
    # (EUP is not the bottleneck, so no approx reciprocal).
    gv = 1.0 / (1.0 + jnp.exp(-10.0 * (z - x1)))          # [BT, P*M]
    gv_ref[...] = gv

    # Gated residual tower: h_m = Gv[:, m] * relu(fcM[m](h_{m-1})); out += h_m.
    h_bf = x_bf
    out = x
    for m in range(M):                           # M small & static -> unrolled
        hm = jnp.dot(h_bf, fcw_ref[m],
                     preferred_element_type=jnp.float32) + fcb_ref[m]
        # Lane-dense per-sub-row gate via exact fp32 one-hot matmul:
        # gate[r, p*Nout + j] = gv[r, p*M + m].  Only one gate tile live.
        gate = jnp.dot(gv, e_ref[m], preferred_element_type=jnp.float32)
        h = gate * jnp.maximum(hm, 0.0)
        out = out + h
        h_bf = h.astype(jnp.bfloat16)

    out_ref[...] = out


def _block_diag(w, p):
    """[in, out] -> [p*in, p*out] with p copies of w on the diagonal."""
    eye = jnp.eye(p, dtype=w.dtype)
    return jnp.einsum("ab,io->aibo", eye, w).reshape(p * w.shape[0],
                                                     p * w.shape[1])


def _default_pack(nout):
    """Pack enough rows to fill 128 lanes (256 on v6e/v7x with 256-wide MXU)."""
    target = 128
    try:
        kind = jax.devices()[0].device_kind.lower()
        if ("v6" in kind) or ("v7" in kind):
            target = 256
    except Exception:
        pass
    return max(1, target // max(1, nout))


def vnet_forward(x, params, *, x1, M, b_tile=None, pack=None):
    B, Nout = x.shape
    P = int(pack) if pack is not None else _default_pack(Nout)
    P = max(1, P)

    # Grid is over packed rows (each packed row carries P batch rows).
    n_rows = -(-B // P)
    if b_tile is None:
        b_tile = 1024
        if n_rows > 16:
            # Keep at least 2 grid tiles so v7x megacore sharding has work.
            b_tile = min(b_tile, _round_up(-(-n_rows // 2), 8))
    b_tile = max(8, (int(b_tile) // 8) * 8)
    b_tile = min(b_tile, _round_up(n_rows, 8))
    n_tiles = -(-n_rows // b_tile)
    rows_pad = n_tiles * b_tile
    B_pad = rows_pad * P

    PN, P20, P10, PM = P * Nout, P * 20, P * 10, P * M

    # Pack P consecutive batch rows into the lane axis (contiguous -> free).
    x_p = x.astype(jnp.float32)
    if B_pad != B:
        x_p = jnp.pad(x_p, ((0, B_pad - B), (0, 0)))
    x_p = x_p.reshape(rows_pad, PN)

    # Block-diagonal bf16 weights (P copies on the diagonal); lane-tiled biases.
    g1w = _block_diag(params["g1_w"], P).astype(jnp.bfloat16)
    g2w = _block_diag(params["g2_w"], P).astype(jnp.bfloat16)
    g3w = _block_diag(params["g3_w"], P).astype(jnp.bfloat16)
    fcw = jnp.stack([_block_diag(params["fcM_w"][m], P)
                     for m in range(M)]).astype(jnp.bfloat16)
    g1b = jnp.tile(params["g1_b"].astype(jnp.float32), (1, P))
    g2b = jnp.tile(params["g2_b"].astype(jnp.float32), (1, P))
    g3b = jnp.tile(params["g3_b"].astype(jnp.float32), (1, P))
    fcb = jnp.tile(params["fcM_b"].astype(jnp.float32), (1, P))

    # One-hot gate-expansion matrices: E[m, p*M + m, p*Nout + j] = 1.
    lane_sub = jnp.arange(PN) // Nout            # sub-row index of each lane
    row_idx = jnp.arange(PM)
    e_mats = jnp.stack([
        (row_idx[:, None] == (lane_sub[None, :] * M + m)).astype(jnp.float32)
        for m in range(M)
    ])                                            # [M, P*M, P*Nout]

    kernel = functools.partial(_vnet_kernel, x1=float(x1), M=int(M))

    flops = 2 * rows_pad * (PN * P20 + P20 * P10 + P10 * PM
                            + M * (PN * PN + PM * PN))
    w_bytes = int((g1w.size + g2w.size + g3w.size + fcw.size) * 2
                  + (g1b.size + g2b.size + g3b.size + fcb.size
                     + e_mats.size) * 4)
    bytes_accessed = int(rows_pad * PN * 4       # x read
                         + rows_pad * PN * 4     # out write
                         + rows_pad * PM * 4     # gv write
                         + w_bytes)

    # Raise the scoped-VMEM limit only when the footprint would brush v5e's
    # 16 MiB default (cap well under v7x's 64 MiB physical).
    tile_bytes = b_tile * PN * 4
    vmem_est = 12 * tile_bytes + (4 << 20)       # pipeline bufs + temporaries
    cp_kwargs = dict(dimension_semantics=("parallel",))
    if vmem_est > (14 << 20):
        cp_kwargs["vmem_limit_bytes"] = int(
            min(max(vmem_est + (8 << 20), 32 << 20), 56 << 20))

    out, gv = pl.pallas_call(
        kernel,
        grid=(n_tiles,),
        in_specs=[
            pl.BlockSpec((b_tile, PN), lambda i: (i, 0)),        # x (streamed)
            pl.BlockSpec((PN, P20), lambda i: (0, 0)),           # g1_w (resident)
            pl.BlockSpec((1, P20), lambda i: (0, 0)),            # g1_b
            pl.BlockSpec((P20, P10), lambda i: (0, 0)),          # g2_w
            pl.BlockSpec((1, P10), lambda i: (0, 0)),            # g2_b
            pl.BlockSpec((P10, PM), lambda i: (0, 0)),           # g3_w
            pl.BlockSpec((1, PM), lambda i: (0, 0)),             # g3_b
            pl.BlockSpec((M, PN, PN), lambda i: (0, 0, 0)),      # fcM_w
            pl.BlockSpec((M, PN), lambda i: (0, 0)),             # fcM_b
            pl.BlockSpec((M, PM, PN), lambda i: (0, 0, 0)),      # gate expansion
        ],
        out_specs=(
            pl.BlockSpec((b_tile, PN), lambda i: (i, 0)),        # out (lane-dense)
            pl.BlockSpec((b_tile, PM), lambda i: (i, 0)),        # gv  (lane-dense)
        ),
        out_shape=(
            jax.ShapeDtypeStruct((rows_pad, PN), jnp.float32),
            jax.ShapeDtypeStruct((rows_pad, PM), jnp.float32),
        ),
        compiler_params=pltpu.CompilerParams(**cp_kwargs),
        cost_estimate=pl.CostEstimate(flops=int(flops),
                                      transcendentals=int(rows_pad * PM),
                                      bytes_accessed=bytes_accessed),
    )(x_p, g1w, g1b, g2w, g2b, g3w, g3b, fcw, fcb, e_mats)

    # Unpack lanes back to per-batch-row layout (free reshapes) and drop pad.
    out = out.reshape(B_pad, Nout)[:B]
    gv = gv.reshape(B_pad, M)[:B]
    return out, gv


def init_params(key, Nout, M):
    """Deterministic synthetic parameters.

    PyTorch nn.Linear stores weight as [out, in]; here weights are kept
    pre-transposed as [in, out] since the kernel computes x @ W + b.
    """
    ks = jax.random.split(key, 8)
    scale = 0.1
    return {
        "g1_w": scale * jax.random.normal(ks[0], (Nout, 20), jnp.float32),
        "g1_b": scale * jax.random.normal(ks[1], (1, 20), jnp.float32),
        "g2_w": scale * jax.random.normal(ks[2], (20, 10), jnp.float32),
        "g2_b": scale * jax.random.normal(ks[3], (1, 10), jnp.float32),
        "g3_w": scale * jax.random.normal(ks[4], (10, M), jnp.float32),
        "g3_b": scale * jax.random.normal(ks[5], (1, M), jnp.float32),
        "fcM_w": scale * jax.random.normal(ks[6], (M, Nout, Nout), jnp.float32),
        "fcM_b": scale * jax.random.normal(ks[7], (M, Nout), jnp.float32),
    }


def vnet_reference(x, params, *, x1, M):
    """Plain-JAX fp32 reference mirroring the PyTorch forward."""
    g = jnp.maximum(x @ params["g1_w"] + params["g1_b"], 0.0)
    g = jnp.maximum(g @ params["g2_w"] + params["g2_b"], 0.0)
    z = g @ params["g3_w"] + params["g3_b"]
    gv = 1.0 / (1.0 + jnp.exp(-10.0 * (z - x1)))
    h = x
    out = x
    for m in range(M):
        hm = jnp.maximum(h @ params["fcM_w"][m] + params["fcM_b"][m], 0.0)
        h = gv[:, m:m + 1] * hm
        out = out + h
    return out, gv


if __name__ == "__main__":
    key = jax.random.PRNGKey(0)
    k_x, k_p, k_x2 = jax.random.split(key, 3)

    B, Nout, M, x1 = 8, 32, 4, 0.5
    params = init_params(k_p, Nout, M)
    x = jax.random.normal(k_x, (B, Nout), jnp.float32)

    # Device-default packing factor (4 on 128-wide MXU chips, 8 on v6e/v7x).
    out, gv = vnet_forward(x, params, x1=x1, M=M)
    jax.block_until_ready((out, gv))

    ref_out, ref_gv = vnet_reference(x, params, x1=x1, M=M)
    assert out.shape == (B, Nout) and gv.shape == (B, M)
    # Tolerance covers bf16 MXU weights/activations vs fp32 reference.
    assert jnp.allclose(out, ref_out, atol=5e-2), float(jnp.max(jnp.abs(out - ref_out)))
    assert jnp.allclose(gv, ref_gv, atol=5e-2), float(jnp.max(jnp.abs(gv - ref_gv)))

    # Exercise the multi-tile grid + batch-tail padding + small packing factor.
    B2 = 40
    x2 = jax.random.normal(k_x2, (B2, Nout), jnp.float32)
    out2, gv2 = vnet_forward(x2, params, x1=x1, M=M, pack=2, b_tile=8)
    jax.block_until_ready((out2, gv2))
    ref_out2, ref_gv2 = vnet_reference(x2, params, x1=x1, M=M)
    assert out2.shape == (B2, Nout) and gv2.shape == (B2, M)
    assert jnp.allclose(out2, ref_out2, atol=5e-2)
    assert jnp.allclose(gv2, ref_gv2, atol=5e-2)

    print("KERNEL_OK")
</pallas_src>

<mosaic_0001>
module attributes {stable_mosaic.version = 11 : i64} {
  func.func @_vnet_kernel(%arg0: i32, %arg1: memref<8x128xf32, #tpu.memory_space<vmem>>, %arg2: memref<128x80xbf16, #tpu.memory_space<vmem>>, %arg3: memref<1x80xf32, #tpu.memory_space<vmem>>, %arg4: memref<80x40xbf16, #tpu.memory_space<vmem>>, %arg5: memref<1x40xf32, #tpu.memory_space<vmem>>, %arg6: memref<40x16xbf16, #tpu.memory_space<vmem>>, %arg7: memref<1x16xf32, #tpu.memory_space<vmem>>, %arg8: memref<4x128x128xbf16, #tpu.memory_space<vmem>>, %arg9: memref<4x128xf32, #tpu.memory_space<vmem>>, %arg10: memref<4x16x128xf32, #tpu.memory_space<vmem>>, %arg11: memref<8x128xf32, #tpu.memory_space<vmem>>, %arg12: memref<8x16xf32, #tpu.memory_space<vmem>>) attributes {dimension_semantics = [#tpu.dimension_semantics<parallel>], iteration_bounds = array<i64: 1>, scalar_prefetch = 0 : i64, scratch_operands = 0 : i64, tpu.core_type = #tpu.core_type<tc>, window_params = [{transform_indices = @transform_0, window_bounds = array<i64: 8, 128>}, {pipeline_mode = #tpu.pipeline_mode<synchronous>, transform_indices = @transform_1, window_bounds = array<i64: 128, 80>}, {pipeline_mode = #tpu.pipeline_mode<synchronous>, transform_indices = @transform_2, window_bounds = array<i64: 1, 80>}, {pipeline_mode = #tpu.pipeline_mode<synchronous>, transform_indices = @transform_3, window_bounds = array<i64: 80, 40>}, {pipeline_mode = #tpu.pipeline_mode<synchronous>, transform_indices = @transform_4, window_bounds = array<i64: 1, 40>}, {pipeline_mode = #tpu.pipeline_mode<synchronous>, transform_indices = @transform_5, window_bounds = array<i64: 40, 16>}, {pipeline_mode = #tpu.pipeline_mode<synchronous>, transform_indices = @transform_6, window_bounds = array<i64: 1, 16>}, {pipeline_mode = #tpu.pipeline_mode<synchronous>, transform_indices = @transform_7, window_bounds = array<i64: 4, 128, 128>}, {pipeline_mode = #tpu.pipeline_mode<synchronous>, transform_indices = @transform_8, window_bounds = array<i64: 4, 128>}, {pipeline_mode = #tpu.pipeline_mode<synchronous>, transform_indices = @transform_9, window_bounds = array<i64: 4, 16, 128>}, {transform_indices = @transform_10, window_bounds = array<i64: 8, 128>}, {transform_indices = @transform_11, window_bounds = array<i64: 8, 16>}]} {
    %c0 = arith.constant 0 : index
    %c0_0 = arith.constant 0 : index
    %0 = vector.load %arg1[%c0, %c0_0] : memref<8x128xf32, #tpu.memory_space<vmem>>, vector<8x128xf32>
    %1 = arith.truncf %0 : vector<8x128xf32> to vector<8x128xbf16>
    %c0_1 = arith.constant 0 : index
    %c0_2 = arith.constant 0 : index
    %2 = vector.load %arg2[%c0_1, %c0_2] : memref<128x80xbf16, #tpu.memory_space<vmem>>, vector<128x80xbf16>
    %cst = arith.constant dense<0.000000e+00> : vector<8x80xf32>
    %3 = tpu.matmul %1, %2, %cst {dimension_numbers = #tpu.dot_dimension_numbers<[1], [0], [0], [1], [0, 0, 1, 1], [], []>} : vector<8x128xbf16>, vector<128x80xbf16>, vector<8x80xf32> -> vector<8x80xf32>
    %c0_3 = arith.constant 0 : index
    %c0_4 = arith.constant 0 : index
    %4 = vector.load %arg3[%c0_3, %c0_4] : memref<1x80xf32, #tpu.memory_space<vmem>>, vector<1x80xf32>
    %5 = vector.broadcast %4 : vector<1x80xf32> to vector<8x80xf32>
    %6 = arith.addf %3, %5 : vector<8x80xf32>
    %cst_5 = arith.constant 0.000000e+00 : f32
    %7 = vector.broadcast %cst_5 : f32 to vector<8x80xf32>
    %8 = arith.maximumf %6, %7 : vector<8x80xf32>
    %9 = arith.truncf %8 : vector<8x80xf32> to vector<8x80xbf16>
    %c0_6 = arith.constant 0 : index
    %c0_7 = arith.constant 0 : index
    %10 = vector.load %arg4[%c0_6, %c0_7] : memref<80x40xbf16, #tpu.memory_space<vmem>>, vector<80x40xbf16>
    %cst_8 = arith.constant dense<0.000000e+00> : vector<8x40xf32>
    %11 = tpu.matmul %9, %10, %cst_8 {dimension_numbers = #tpu.dot_dimension_numbers<[1], [0], [0], [1], [0, 0, 1, 1], [], []>} : vector<8x80xbf16>, vector<80x40xbf16>, vector<8x40xf32> -> vector<8x40xf32>
    %c0_9 = arith.constant 0 : index
    %c0_10 = arith.constant 0 : index
    %12 = vector.load %arg5[%c0_9, %c0_10] : memref<1x40xf32, #tpu.memory_space<vmem>>, vector<1x40xf32>
    %13 = vector.broadcast %12 : vector<1x40xf32> to vector<8x40xf32>
    %14 = arith.addf %11, %13 : vector<8x40xf32>
    %cst_11 = arith.constant 0.000000e+00 : f32
    %15 = vector.broadcast %cst_11 : f32 to vector<8x40xf32>
    %16 = arith.maximumf %14, %15 : vector<8x40xf32>
    %17 = arith.truncf %16 : vector<8x40xf32> to vector<8x40xbf16>
    %c0_12 = arith.constant 0 : index
    %c0_13 = arith.constant 0 : index
    %18 = vector.load %arg6[%c0_12, %c0_13] : memref<40x16xbf16, #tpu.memory_space<vmem>>, vector<40x16xbf16>
    %cst_14 = arith.constant dense<0.000000e+00> : vector<8x16xf32>
    %19 = tpu.matmul %17, %18, %cst_14 {dimension_numbers = #tpu.dot_dimension_numbers<[1], [0], [0], [1], [0, 0, 1, 1], [], []>} : vector<8x40xbf16>, vector<40x16xbf16>, vector<8x16xf32> -> vector<8x16xf32>
    %c0_15 = arith.constant 0 : index
    %c0_16 = arith.constant 0 : index
    %20 = vector.load %arg7[%c0_15, %c0_16] : memref<1x16xf32, #tpu.memory_space<vmem>>, vector<1x16xf32>
    %21 = vector.broadcast %20 : vector<1x16xf32> to vector<8x16xf32>
    %22 = arith.addf %19, %21 : vector<8x16xf32>
    %cst_17 = arith.constant 5.000000e-01 : f32
    %23 = vector.broadcast %cst_17 : f32 to vector<8x16xf32>
    %24 = arith.subf %22, %23 : vector<8x16xf32>
    %cst_18 = arith.constant -1.000000e+01 : f32
    %25 = vector.broadcast %cst_18 : f32 to vector<8x16xf32>
    %26 = arith.mulf %25, %24 : vector<8x16xf32>
    %27 = math.exp %26 : vector<8x16xf32>
    %cst_19 = arith.constant 1.000000e+00 : f32
    %28 = vector.broadcast %cst_19 : f32 to vector<8x16xf32>
    %29 = arith.addf %28, %27 : vector<8x16xf32>
    %cst_20 = arith.constant 1.000000e+00 : f32
    %30 = vector.broadcast %cst_20 : f32 to vector<8x16xf32>
    %31 = arith.divf %30, %29 : vector<8x16xf32>
    %c0_21 = arith.constant 0 : index
    %c0_22 = arith.constant 0 : index
    %32 = vector.load %arg12[%c0_21, %c0_22] : memref<8x16xf32, #tpu.memory_space<vmem>>, vector<8x16xf32>
    tpu.vector_store %arg12[%c0_21, %c0_22], %31 {strides = array<i32>} : memref<8x16xf32, #tpu.memory_space<vmem>>, vector<8x16xf32>,
    %c0_23 = arith.constant 0 : index
    %c0_24 = arith.constant 0 : index
    %c0_25 = arith.constant 0 : index
    %33 = vector.load %arg8[%c0_23, %c0_24, %c0_25] : memref<4x128x128xbf16, #tpu.memory_space<vmem>>, vector<1x128x128xbf16>
    %34 = vector.shape_cast %33 : vector<1x128x128xbf16> to vector<128x128xbf16>
    %cst_26 = arith.constant dense<0.000000e+00> : vector<8x128xf32>
    %35 = tpu.matmul %1, %34, %cst_26 {dimension_numbers = #tpu.dot_dimension_numbers<[1], [0], [0], [1], [0, 0, 1, 1], [], []>} : vector<8x128xbf16>, vector<128x128xbf16>, vector<8x128xf32> -> vector<8x128xf32>
    %c0_27 = arith.constant 0 : index
    %c0_28 = arith.constant 0 : index
    %36 = vector.load %arg9[%c0_27, %c0_28] : memref<4x128xf32, #tpu.memory_space<vmem>>, vector<1x128xf32>
    %37 = vector.shape_cast %36 : vector<1x128xf32> to vector<128xf32>
    %38 = vector.shape_cast %37 : vector<128xf32> to vector<1x128xf32>
    %39 = vector.broadcast %38 : vector<1x128xf32> to vector<8x128xf32>
    %40 = arith.addf %35, %39 : vector<8x128xf32>
    %c0_29 = arith.constant 0 : index
    %c0_30 = arith.constant 0 : index
    %c0_31 = arith.constant 0 : index
    %41 = vector.load %arg10[%c0_29, %c0_30, %c0_31] : memref<4x16x128xf32, #tpu.memory_space<vmem>>, vector<1x16x128xf32>
    %42 = vector.shape_cast %41 : vector<1x16x128xf32> to vector<16x128xf32>
    %cst_32 = arith.constant dense<0.000000e+00> : vector<8x128xf32>
    %43 = tpu.matmul %31, %42, %cst_32 {dimension_numbers = #tpu.dot_dimension_numbers<[1], [0], [0], [1], [0, 0, 1, 1], [], []>} : vector<8x16xf32>, vector<16x128xf32>, vector<8x128xf32> -> vector<8x128xf32>
    %cst_33 = arith.constant 0.000000e+00 : f32
    %44 = vector.broadcast %cst_33 : f32 to vector<8x128xf32>
    %45 = arith.maximumf %40, %44 : vector<8x128xf32>
    %46 = arith.mulf %43, %45 : vector<8x128xf32>
    %47 = arith.addf %0, %46 : vector<8x128xf32>
    %48 = arith.truncf %46 : vector<8x128xf32> to vector<8x128xbf16>
    %c1 = arith.constant 1 : index
    %c0_34 = arith.constant 0 : index
    %c0_35 = arith.constant 0 : index
    %49 = vector.load %arg8[%c1, %c0_34, %c0_35] : memref<4x128x128xbf16, #tpu.memory_space<vmem>>, vector<1x128x128xbf16>
    %50 = vector.shape_cast %49 : vector<1x128x128xbf16> to vector<128x128xbf16>
    %cst_36 = arith.constant dense<0.000000e+00> : vector<8x128xf32>
    %51 = tpu.matmul %48, %50, %cst_36 {dimension_numbers = #tpu.dot_dimension_numbers<[1], [0], [0], [1], [0, 0, 1, 1], [], []>} : vector<8x128xbf16>, vector<128x128xbf16>, vector<8x128xf32> -> vector<8x128xf32>
    %c1_37 = arith.constant 1 : index
    %c0_38 = arith.constant 0 : index
    %52 = vector.load %arg9[%c1_37, %c0_38] : memref<4x128xf32, #tpu.memory_space<vmem>>, vector<1x128xf32>
    %53 = vector.shape_cast %52 : vector<1x128xf32> to vector<128xf32>
    %54 = vector.shape_cast %53 : vector<128xf32> to vector<1x128xf32>
    %55 = vector.broadcast %54 : vector<1x128xf32> to vector<8x128xf32>
    %56 = arith.addf %51, %55 : vector<8x128xf32>
    %c1_39 = arith.constant 1 : index
    %c0_40 = arith.constant 0 : index
    %c0_41 = arith.constant 0 : index
    %57 = vector.load %arg10[%c1_39, %c0_40, %c0_41] : memref<4x16x128xf32, #tpu.memory_space<vmem>>, vector<1x16x128xf32>
    %58 = vector.shape_cast %57 : vector<1x16x128xf32> to vector<16x128xf32>
    %cst_42 = arith.constant dense<0.000000e+00> : vector<8x128xf32>
    %59 = tpu.matmul %31, %58, %cst_42 {dimension_numbers = #tpu.dot_dimension_numbers<[1], [0], [0], [1], [0, 0, 1, 1], [], []>} : vector<8x16xf32>, vector<16x128xf32>, vector<8x128xf32> -> vector<8x128xf32>
    %cst_43 = arith.constant 0.000000e+00 : f32
    %60 = vector.broadcast %cst_43 : f32 to vector<8x128xf32>
    %61 = arith.maximumf %56, %60 : vector<8x128xf32>
    %62 = arith.mulf %59, %61 : vector<8x128xf32>
    %63 = arith.addf %47, %62 : vector<8x128xf32>
    %64 = arith.truncf %62 : vector<8x128xf32> to vector<8x128xbf16>
    %c2 = arith.constant 2 : index
    %c0_44 = arith.constant 0 : index
    %c0_45 = arith.constant 0 : index
    %65 = vector.load %arg8[%c2, %c0_44, %c0_45] : memref<4x128x128xbf16, #tpu.memory_space<vmem>>, vector<1x128x128xbf16>
    %66 = vector.shape_cast %65 : vector<1x128x128xbf16> to vector<128x128xbf16>
    %cst_46 = arith.constant dense<0.000000e+00> : vector<8x128xf32>
    %67 = tpu.matmul %64, %66, %cst_46 {dimension_numbers = #tpu.dot_dimension_numbers<[1], [0], [0], [1], [0, 0, 1, 1], [], []>} : vector<8x128xbf16>, vector<128x128xbf16>, vector<8x128xf32> -> vector<8x128xf32>
    %c2_47 = arith.constant 2 : index
    %c0_48 = arith.constant 0 : index
    %68 = vector.load %arg9[%c2_47, %c0_48] : memref<4x128xf32, #tpu.memory_space<vmem>>, vector<1x128xf32>
    %69 = vector.shape_cast %68 : vector<1x128xf32> to vector<128xf32>
    %70 = vector.shape_cast %69 : vector<128xf32> to vector<1x128xf32>
    %71 = vector.broadcast %70 : vector<1x128xf32> to vector<8x128xf32>
    %72 = arith.addf %67, %71 : vector<8x128xf32>
    %c2_49 = arith.constant 2 : index
    %c0_50 = arith.constant 0 : index
    %c0_51 = arith.constant 0 : index
    %73 = vector.load %arg10[%c2_49, %c0_50, %c0_51] : memref<4x16x128xf32, #tpu.memory_space<vmem>>, vector<1x16x128xf32>
    %74 = vector.shape_cast %73 : vector<1x16x128xf32> to vector<16x128xf32>
    %cst_52 = arith.constant dense<0.000000e+00> : vector<8x128xf32>
    %75 = tpu.matmul %31, %74, %cst_52 {dimension_numbers = #tpu.dot_dimension_numbers<[1], [0], [0], [1], [0, 0, 1, 1], [], []>} : vector<8x16xf32>, vector<16x128xf32>, vector<8x128xf32> -> vector<8x128xf32>
    %cst_53 = arith.constant 0.000000e+00 : f32
    %76 = vector.broadcast %cst_53 : f32 to vector<8x128xf32>
    %77 = arith.maximumf %72, %76 : vector<8x128xf32>
    %78 = arith.mulf %75, %77 : vector<8x128xf32>
    %79 = arith.addf %63, %78 : vector<8x128xf32>
    %80 = arith.truncf %78 : vector<8x128xf32> to vector<8x128xbf16>
    %c3 = arith.constant 3 : index
    %c0_54 = arith.constant 0 : index
    %c0_55 = arith.constant 0 : index
    %81 = vector.load %arg8[%c3, %c0_54, %c0_55] : memref<4x128x128xbf16, #tpu.memory_space<vmem>>, vector<1x128x128xbf16>
    %82 = vector.shape_cast %81 : vector<1x128x128xbf16> to vector<128x128xbf16>
    %cst_56 = arith.constant dense<0.000000e+00> : vector<8x128xf32>
    %83 = tpu.matmul %80, %82, %cst_56 {dimension_numbers = #tpu.dot_dimension_numbers<[1], [0], [0], [1], [0, 0, 1, 1], [], []>} : vector<8x128xbf16>, vector<128x128xbf16>, vector<8x128xf32> -> vector<8x128xf32>
    %c3_57 = arith.constant 3 : index
    %c0_58 = arith.constant 0 : index
    %84 = vector.load %arg9[%c3_57, %c0_58] : memref<4x128xf32, #tpu.memory_space<vmem>>, vector<1x128xf32>
    %85 = vector.shape_cast %84 : vector<1x128xf32> to vector<128xf32>
    %86 = vector.shape_cast %85 : vector<128xf32> to vector<1x128xf32>
    %87 = vector.broadcast %86 : vector<1x128xf32> to vector<8x128xf32>
    %88 = arith.addf %83, %87 : vector<8x128xf32>
    %c3_59 = arith.constant 3 : index
    %c0_60 = arith.constant 0 : index
    %c0_61 = arith.constant 0 : index
    %89 = vector.load %arg10[%c3_59, %c0_60, %c0_61] : memref<4x16x128xf32, #tpu.memory_space<vmem>>, vector<1x16x128xf32>
    %90 = vector.shape_cast %89 : vector<1x16x128xf32> to vector<16x128xf32>
    %cst_62 = arith.constant dense<0.000000e+00> : vector<8x128xf32>
    %91 = tpu.matmul %31, %90, %cst_62 {dimension_numbers = #tpu.dot_dimension_numbers<[1], [0], [0], [1], [0, 0, 1, 1], [], []>} : vector<8x16xf32>, vector<16x128xf32>, vector<8x128xf32> -> vector<8x128xf32>
    %cst_63 = arith.constant 0.000000e+00 : f32
    %92 = vector.broadcast %cst_63 : f32 to vector<8x128xf32>
    %93 = arith.maximumf %88, %92 : vector<8x128xf32>
    %94 = arith.mulf %91, %93 : vector<8x128xf32>
    %95 = arith.addf %79, %94 : vector<8x128xf32>
    %c0_64 = arith.constant 0 : index
    %c0_65 = arith.constant 0 : index
    %96 = vector.load %arg11[%c0_64, %c0_65] : memref<8x128xf32, #tpu.memory_space<vmem>>, vector<8x128xf32>
    tpu.vector_store %arg11[%c0_64, %c0_65], %95 {strides = array<i32>} : memref<8x128xf32, #tpu.memory_space<vmem>>, vector<8x128xf32>,
    return
  }
  func.func @transform_0(%arg0: i32) -> (i32, i32) {
    %c0_i32 = arith.constant 0 : i32
    %c0_i32_0 = arith.constant 0 : i32
    return %arg0, %c0_i32 : i32, i32
  }
  func.func @transform_1(%arg0: i32) -> (i32, i32) {
    %c0_i32 = arith.constant 0 : i32
    %c0_i32_0 = arith.constant 0 : i32
    %c0_i32_1 = arith.constant 0 : i32
    return %c0_i32, %c0_i32_0 : i32, i32
  }
  func.func @transform_2(%arg0: i32) -> (i32, i32) {
    %c0_i32 = arith.constant 0 : i32
    %c0_i32_0 = arith.constant 0 : i32
    %c0_i32_1 = arith.constant 0 : i32
    return %c0_i32, %c0_i32_0 : i32, i32
  }
  func.func @transform_3(%arg0: i32) -> (i32, i32) {
    %c0_i32 = arith.constant 0 : i32
    %c0_i32_0 = arith.constant 0 : i32
    %c0_i32_1 = arith.constant 0 : i32
    return %c0_i32, %c0_i32_0 : i32, i32
  }
  func.func @transform_4(%arg0: i32) -> (i32, i32) {
    %c0_i32 = arith.constant 0 : i32
    %c0_i32_0 = arith.constant 0 : i32
    %c0_i32_1 = arith.constant 0 : i32
    return %c0_i32, %c0_i32_0 : i32, i32
  }
  func.func @transform_5(%arg0: i32) -> (i32, i32) {
    %c0_i32 = arith.constant 0 : i32
    %c0_i32_0 = arith.constant 0 : i32
    %c0_i32_1 = arith.constant 0 : i32
    return %c0_i32, %c0_i32_0 : i32, i32
  }
  func.func @transform_6(%arg0: i32) -> (i32, i32) {
    %c0_i32 = arith.constant 0 : i32
    %c0_i32_0 = arith.constant 0 : i32
    %c0_i32_1 = arith.constant 0 : i32
    return %c0_i32, %c0_i32_0 : i32, i32
  }
  func.func @transform_7(%arg0: i32) -> (i32, i32, i32) {
    %c0_i32 = arith.constant 0 : i32
    %c0_i32_0 = arith.constant 0 : i32
    %c0_i32_1 = arith.constant 0 : i32
    %c0_i32_2 = arith.constant 0 : i32
    return %c0_i32, %c0_i32_0, %c0_i32_1 : i32, i32, i32
  }
  func.func @transform_8(%arg0: i32) -> (i32, i32) {
    %c0_i32 = arith.constant 0 : i32
    %c0_i32_0 = arith.constant 0 : i32
    %c0_i32_1 = arith.constant 0 : i32
    return %c0_i32, %c0_i32_0 : i32, i32
  }
  func.func @transform_9(%arg0: i32) -> (i32, i32, i32) {
    %c0_i32 = arith.constant 0 : i32
    %c0_i32_0 = arith.constant 0 : i32
    %c0_i32_1 = arith.constant 0 : i32
    %c0_i32_2 = arith.constant 0 : i32
    return %c0_i32, %c0_i32_0, %c0_i32_1 : i32, i32, i32
  }
  func.func @transform_10(%arg0: i32) -> (i32, i32) {
    %c0_i32 = arith.constant 0 : i32
    %c0_i32_0 = arith.constant 0 : i32
    return %arg0, %c0_i32 : i32, i32
  }
  func.func @transform_11(%arg0: i32) -> (i32, i32) {
    %c0_i32 = arith.constant 0 : i32
    %c0_i32_0 = arith.constant 0 : i32
    return %arg0, %c0_i32 : i32, i32
  }
}

</mosaic_0001>

<llo_original>
// kernel: tpu_custom_call.1
$region0: #{tpu_custom_call.1}
  #allocation0 [shape = 'u32[]', space=smem, size = 0x4, offset = 0x4, fixed_abs, tag = 'smem constant byte address 0x4 - core index']
  #allocation1 [shape = 'u32[144,128]{1,0:T(1,128)}', space=vmem, size = 0x12000, scoped, tag = 'internal scratch']
  %s0 = inlined_call_operand.vmem [shape: f32[8,128], index: 0, kind: input, shape index: {}]
  %s1 = inlined_call_operand.vmem [shape: bf16[128,80], index: 1, kind: input, shape index: {}]
  %s2 = inlined_call_operand.vmem [shape: f32[1,80], index: 2, kind: input, shape index: {}]
  %s3 = inlined_call_operand.vmem [shape: bf16[80,40], index: 3, kind: input, shape index: {}]
  %s4 = inlined_call_operand.vmem [shape: f32[1,40], index: 4, kind: input, shape index: {}]
  %s5 = inlined_call_operand.vmem [shape: bf16[40,16], index: 5, kind: input, shape index: {}]
  %s6 = inlined_call_operand.vmem [shape: f32[1,16], index: 6, kind: input, shape index: {}]
  %s7 = inlined_call_operand.hbm [shape: bf16[4,128,128], index: 7, kind: input, shape index: {}]
  %s8 = inlined_call_operand.vmem [shape: f32[4,128], index: 8, kind: input, shape index: {}]
  %s9 = inlined_call_operand.vmem [shape: f32[4,16,128], index: 9, kind: input, shape index: {}]
  %s10 = inlined_call_operand.hbm [shape: f32[8,128], index: 10, kind: output, shape index: {0}]
  %s11 = inlined_call_operand.hbm [shape: f32[8,16], index: 11, kind: output, shape index: {1}]
  %12 = xla_tuple %s10, %s11
  %s13 = sld [smem:[#allocation0]]
  $region62: #{tpu_custom_call.1} parent=0
    _
  %s15 = ssub.s32 1, %s13
  %s16 = scalar_select 0, %s15, %s13
  $region1: #{tpu_custom_call.1} parent=0
    #allocation2 [shape = 'u8[131072]{0}', space=vmem, size = 0x20000, scoped, tag = 'input window, operand 7, single buffered']
    #allocation3 [shape = 's32[1]{0}', space=sflag, size = 0x4, scoped, tag = 'scoped memory for tpu_custom_call.1']
    #allocation4 [shape = 's32[1]{0}', space=sflag, size = 0x4, scoped, tag = 'scoped memory for tpu_custom_call.1']
    #allocation5 [shape = 'u8[4096]{0}', space=vmem, size = 0x1000, scoped, tag = 'output window, operand 0, single buffered']
    #allocation6 [shape = 'u8[4096]{0}', space=vmem, size = 0x1000, scoped, tag = 'output window, operand 1, single buffered']
    #allocation7 [shape = 's32[1]{0}', space=sflag, size = 0x4, scoped, tag = 'scoped memory for tpu_custom_call.1']
    %17 = vsyncpa [#allocation3], 0
    %18 = vsyncpa [#allocation4], 0
    %19 = vsyncpa [#allocation7], 0
    // Predicated region
    $region2: #{tpu_custom_call.1} parent=1 // pred_check
      _
    $region3: #{tpu_custom_call.1} parent=1 // pred_check_branch
      %21 = sbr.rel (0) target = $region5
    $region4: #{tpu_custom_call.1} parent=1 // pred_region
      _
    $region5: #{tpu_custom_call.1} parent=1 // pred_fallthru
      _
    // Predicated region
    $region6: #{tpu_custom_call.1} parent=1 // pred_check
      _
    $region7: #{tpu_custom_call.1} parent=1 // pred_check_branch
      %23 = sbr.rel (0) target = $region9
    $region8: #{tpu_custom_call.1} parent=1 // pred_region
      _
    $region9: #{tpu_custom_call.1} parent=1 // pred_fallthru
      _
    // Predicated region
    $region10: #{tpu_custom_call.1} parent=1 // pred_check
      _
    $region11: #{tpu_custom_call.1} parent=1 // pred_check_branch
      %25 = sbr.rel (0) target = $region13
    $region12: #{tpu_custom_call.1} parent=1 // pred_region
      _
    $region13: #{tpu_custom_call.1} parent=1 // pred_fallthru
      _
    // Predicated region
    $region14: #{tpu_custom_call.1} parent=1 // pred_check
      _
    $region15: #{tpu_custom_call.1} parent=1 // pred_check_branch
      %27 = sbr.rel (0) target = $region17
    $region16: #{tpu_custom_call.1} parent=1 // pred_region
      _
    $region17: #{tpu_custom_call.1} parent=1 // pred_fallthru
      _
    // Predicated region
    $region18: #{tpu_custom_call.1} parent=1 // pred_check
      _
    $region19: #{tpu_custom_call.1} parent=1 // pred_check_branch
      %29 = sbr.rel (0) target = $region21
    $region20: #{tpu_custom_call.1} parent=1 // pred_region
      _
    $region21: #{tpu_custom_call.1} parent=1 // pred_fallthru
      _
    // Predicated region
    $region22: #{tpu_custom_call.1} parent=1 // pred_check
      _
    $region23: #{tpu_custom_call.1} parent=1 // pred_check_branch
      %31 = sbr.rel (0) target = $region25
    $region24: #{tpu_custom_call.1} parent=1 // pred_region
      _
    $region25: #{tpu_custom_call.1} parent=1 // pred_fallthru
      _
    // Predicated region
    $region26: #{tpu_custom_call.1} parent=1 // pred_check
      _
    $region27: #{tpu_custom_call.1} parent=1 // pred_check_branch
      %33 = sbr.rel (0) target = $region29
    $region28: #{tpu_custom_call.1} parent=1 // pred_region
      _
    $region29: #{tpu_custom_call.1} parent=1 // pred_fallthru
      _
    // Predicated region
    $region30: #{tpu_custom_call.1} parent=1 // pred_check
      _
    $region31: #{tpu_custom_call.1} parent=1 // pred_check_branch
      %35 = sbr.rel (0) target = $region33
    $region32: #{tpu_custom_call.1} parent=1 // pred_region
      %s37 = ssub.s32 4096, 4096
      %38 = vsyncadd [#allocation3], %s37
      %s39 = sshll.u32 [#allocation2], 4
      %s40 = int_to_ptr.vmem [resolvable:$true] %s39
      %45 = dma.hbm_to_vmem [thread:$0]  %s7, 4096, %s40, [#allocation3], 64, 64, 4
    $region33: #{tpu_custom_call.1} parent=1 // pred_fallthru
      _
    // Predicated region
    $region34: #{tpu_custom_call.1} parent=1 // pred_check
      _
    $region35: #{tpu_custom_call.1} parent=1 // pred_check_branch
      %47 = sbr.rel (0) target = $region37
    $region36: #{tpu_custom_call.1} parent=1 // pred_region
      _
    $region37: #{tpu_custom_call.1} parent=1 // pred_fallthru
      _
    // Predicated region
    $region38: #{tpu_custom_call.1} parent=1 // pred_check
      _
    $region39: #{tpu_custom_call.1} parent=1 // pred_check_branch
      %49 = sbr.rel (0) target = $region41
    $region40: #{tpu_custom_call.1} parent=1 // pred_region
      _
    $region41: #{tpu_custom_call.1} parent=1 // pred_fallthru
      _
    // Predicated region
    $region42: #{tpu_custom_call.1} parent=1 // pred_check
      _
    $region43: #{tpu_custom_call.1} parent=1 // pred_check_branch
      %51 = sbr.rel (0) target = $region45
    $region44: #{tpu_custom_call.1} parent=1 // pred_region
      %52 = dma.done [#allocation3], 4096
    $region45: #{tpu_custom_call.1} parent=1 // pred_fallthru
      _
    %v54 = vld [vmem:[%s0] sm:$0xff]
    %v55 = vpack.c.bf16 %v54, %v54
    %v56 = vld [vmem:[%s1] sm:$0xf]
    %v57 = vld [vmem:[%s1 + $0x4] sm:$0xf]
    %v58 = vld [vmem:[%s1 + $0x8] sm:$0xf]
    %v59 = vld [vmem:[%s1 + $0xc] sm:$0xf]
    %v60 = vld [vmem:[%s1 + $0x10] sm:$0xf]
    %v61 = vld [vmem:[%s1 + $0x14] sm:$0xf]
    %v62 = vld [vmem:[%s1 + $0x18] sm:$0xf]
    %v63 = vld [vmem:[%s1 + $0x1c] sm:$0xf]
    %v64 = vld [vmem:[%s1 + $0x20] sm:$0xf]
    %v65 = vld [vmem:[%s1 + $0x24] sm:$0xf]
    %v66 = vld [vmem:[%s1 + $0x28] sm:$0xf]
    %v67 = vld [vmem:[%s1 + $0x2c] sm:$0xf]
    %v68 = vld [vmem:[%s1 + $0x30] sm:$0xf]
    %v69 = vld [vmem:[%s1 + $0x34] sm:$0xf]
    %v70 = vld [vmem:[%s1 + $0x38] sm:$0xf]
    %v71 = vld [vmem:[%s1 + $0x3c] sm:$0xf]
    %v72 = vld [vmem:[%s2] sm:$0x1]
    %v74 = vlaneseq
    %v75 = vshrl.u32 %v74, 7
    %v76 = vsub.s32 0, %v75
    %v77 = vrot.slane %v72, %v76
    %v95 = vunpack.c.l.b16 %v56
    %v96 = vunpack.c.l.b16 %v57
    %v97 = vunpack.c.l.b16 %v58
    %v98 = vunpack.c.l.b16 %v59
    %v99 = vunpack.c.l.b16 %v60
    %v100 = vunpack.c.l.b16 %v61
    %v101 = vunpack.c.l.b16 %v62
    %v102 = vunpack.c.l.b16 %v63
    %v103 = vunpack.c.l.b16 %v64
    %v104 = vunpack.c.l.b16 %v65
    %v105 = vunpack.c.l.b16 %v66
    %v106 = vunpack.c.l.b16 %v67
    %v107 = vunpack.c.l.b16 %v68
    %v108 = vunpack.c.l.b16 %v69
    %v109 = vunpack.c.l.b16 %v70
    %v110 = vunpack.c.l.b16 %v71
    %v111 = vpack.c.b16 %v96, %v95
    %v112 = vpack.c.b16 %v98, %v97
    %v113 = vpack.c.b16 %v100, %v99
    %v114 = vpack.c.b16 %v102, %v101
    %v115 = vpack.c.b16 %v104, %v103
    %v116 = vpack.c.b16 %v106, %v105
    %v117 = vpack.c.b16 %v108, %v107
    %v118 = vpack.c.b16 %v110, %v109
    %127 = vmatprep.subr.bf16.mxu0 0
    %128 = vmatpush1.bf16.msra.mxu0 %v118
    %129 = vmatprep.subr.bf16.mxu0 0
    %130 = vmatpush1.bf16.msra.mxu0 %v117
    %131 = vmatprep.subr.bf16.mxu0 0
    %132 = vmatpush1.bf16.msra.mxu0 %v116
    %133 = vmatprep.subr.bf16.mxu0 0
    %134 = vmatpush1.bf16.msra.mxu0 %v115
    %135 = vmatprep.subr.bf16.mxu0 0
    %136 = vmatpush1.bf16.msra.mxu0 %v114
    %137 = vmatprep.subr.bf16.mxu0 0
    %138 = vmatpush1.bf16.msra.mxu0 %v113
    %139 = vmatprep.subr.bf16.mxu0 0
    %140 = vmatpush1.bf16.msra.mxu0 %v112
    %141 = vmatprep.subr.bf16.mxu0 0
    %142 = vmatpush1.bf16.msra.mxu0 %v111
    %143 = vmatprep.subr.bf16.mxu0 0
    %144 = vmatpush2.bf16.msra.mxu0 0
    %145 = vmatprep.subr.bf16.mxu0 0
    %146 = vmatpush2.bf16.msra.mxu0 0
    %147 = vmatprep.subr.bf16.mxu0 0
    %148 = vmatpush2.bf16.msra.mxu0 0
    %149 = vmatprep.subr.bf16.mxu0 0
    %150 = vmatpush2.bf16.msra.mxu0 0
    %151 = vmatprep.subr.bf16.mxu0 0
    %152 = vmatpush2.bf16.msra.mxu0 0
    %153 = vmatprep.subr.bf16.mxu0 0
    %154 = vmatpush2.bf16.msra.mxu0 0
    %155 = vmatprep.subr.bf16.mxu0 0
    %156 = vmatpush2.bf16.msra.mxu0 0
    %157 = vmatprep.subr.bf16.mxu0 0
    %158 = vmatpush2.bf16.msra.mxu0 0
    %159 = vmatprep.mubr.bf16.mxu0 0
    %160 = vmatmul.mubr.bf16.gmra.mxu0 %v55
    %v161 = vpop.f32.mrf.mxu0
    %v162 = vadd.f32 %v77, %v161
    %v163 = vpop.f32.mrf.mxu0
    %v164 = vpop.f32.mrf.mxu0
    %v165 = vpop.f32.mrf.mxu0
    %166 = vdwg.mxu0
    %v167 = vmax.f32 %v162, 0.0
    %v168 = vpack.c.bf16 %v167, %v167
    %v169 = vld [vmem:[%s3] sm:$0xf]
    %v170 = vld [vmem:[%s3 + $0x4] sm:$0xf]
    %v171 = vld [vmem:[%s3 + $0x8] sm:$0xf]
    %v172 = vld [vmem:[%s3 + $0xc] sm:$0xf]
    %v173 = vld [vmem:[%s3 + $0x10] sm:$0xf]
    %v174 = vld [vmem:[%s3 + $0x14] sm:$0xf]
    %v175 = vld [vmem:[%s3 + $0x18] sm:$0xf]
    %v176 = vld [vmem:[%s3 + $0x1c] sm:$0xf]
    %v177 = vld [vmem:[%s3 + $0x20] sm:$0xf]
    %v178 = vld [vmem:[%s3 + $0x24] sm:$0xf]
    %v179 = vld [vmem:[%s4] sm:$0x1]
    %v181 = vlaneseq
    %v182 = vshrl.u32 %v181, 7
    %v183 = vsub.s32 0, %v182
    %v184 = vrot.slane %v179, %v183
    %v196 = vunpack.c.l.b16 %v169
    %v197 = vunpack.c.l.b16 %v170
    %v198 = vunpack.c.l.b16 %v171
    %v199 = vunpack.c.l.b16 %v172
    %v200 = vunpack.c.l.b16 %v173
    %v201 = vunpack.c.l.b16 %v174
    %v202 = vunpack.c.l.b16 %v175
    %v203 = vunpack.c.l.b16 %v176
    %v204 = vunpack.c.l.b16 %v177
    %v205 = vunpack.c.l.b16 %v178
    %v206 = vpack.c.b16 %v197, %v196
    %v207 = vpack.c.b16 %v199, %v198
    %v208 = vpack.c.b16 %v201, %v200
    %v209 = vpack.c.b16 %v203, %v202
    %v210 = vpack.c.b16 %v205, %v204
    %vm216 = vcmask 654336
    %v218 = vsel %vm216, %v168, 0
    %220 = vmatprep.subr.bf16.mxu0 0
    %221 = vmatpush1.bf16.msra.mxu0 0
    %222 = vmatprep.subr.bf16.mxu0 0
    %223 = vmatpush1.bf16.msra.mxu0 0
    %224 = vmatprep.subr.bf16.mxu0 0
    %225 = vmatpush1.bf16.msra.mxu0 0
    %226 = vmatprep.subr.bf16.mxu0 0
    %227 = vmatpush1.bf16.msra.mxu0 %v210
    %228 = vmatprep.subr.bf16.mxu0 0
    %229 = vmatpush1.bf16.msra.mxu0 %v209
    %230 = vmatprep.subr.bf16.mxu0 0
    %231 = vmatpush1.bf16.msra.mxu0 %v208
    %232 = vmatprep.subr.bf16.mxu0 0
    %233 = vmatpush1.bf16.msra.mxu0 %v207
    %234 = vmatprep.subr.bf16.mxu0 0
    %235 = vmatpush1.bf16.msra.mxu0 %v206
    %236 = vmatprep.subr.bf16.mxu0 0
    %237 = vmatpush2.bf16.msra.mxu0 0
    %238 = vmatprep.subr.bf16.mxu0 0
    %239 = vmatpush2.bf16.msra.mxu0 0
    %240 = vmatprep.subr.bf16.mxu0 0
    %241 = vmatpush2.bf16.msra.mxu0 0
    %242 = vmatprep.subr.bf16.mxu0 0
    %243 = vmatpush2.bf16.msra.mxu0 0
    %244 = vmatprep.subr.bf16.mxu0 0
    %245 = vmatpush2.bf16.msra.mxu0 0
    %246 = vmatprep.subr.bf16.mxu0 0
    %247 = vmatpush2.bf16.msra.mxu0 0
    %248 = vmatprep.subr.bf16.mxu0 0
    %249 = vmatpush2.bf16.msra.mxu0 0
    %250 = vmatprep.subr.bf16.mxu0 0
    %251 = vmatpush2.bf16.msra.mxu0 0
    %252 = vmatprep.mubr.bf16.mxu0 0
    %253 = vmatmul.mubr.bf16.gmra.mxu0 %v218
    %v254 = vpop.f32.mrf.mxu0
    %v255 = vadd.f32 %v184, %v254
    %v256 = vpop.f32.mrf.mxu0
    %v257 = vpop.f32.mrf.mxu0
    %v258 = vpop.f32.mrf.mxu0
    %259 = vdwg.mxu0
    %v260 = vmax.f32 %v255, 0.0
    %v261 = vpack.c.bf16 %v260, %v260
    %v262 = vld [vmem:[%s5] sm:$0xf]
    %v263 = vld [vmem:[%s5 + $0x4] sm:$0xf]
    %v264 = vld [vmem:[%s5 + $0x8] sm:$0xf]
    %v265 = vld [vmem:[%s5 + $0xc] sm:$0xf]
    %v266 = vld [vmem:[%s5 + $0x10] sm:$0xf]
    %v267 = vld [vmem:[%s6] sm:$0x1]
    %v269 = vlaneseq
    %v270 = vshrl.u32 %v269, 7
    %v271 = vsub.s32 0, %v270
    %v272 = vrot.slane %v267, %v271
    %v279 = vunpack.c.l.b16 %v262
    %v280 = vunpack.c.l.b16 %v263
    %v281 = vunpack.c.l.b16 %v264
    %v282 = vunpack.c.l.b16 %v265
    %v283 = vunpack.c.l.b16 %v266
    %v284 = vpack.c.b16 %v280, %v279
    %v285 = vpack.c.b16 %v282, %v281
    %v286 = vpack.c.b16 %v283, %v283
    %vm289 = vcmask 326656
    %v291 = vsel %vm289, %v261, 0
    %vm293 = vcmask 1043456
    %v295 = vsel %vm293, %v286, 0
    %297 = vmatprep.subr.bf16.mxu0 0
    %298 = vmatpush1.bf16.msra.mxu0 0
    %299 = vmatprep.subr.bf16.mxu0 0
    %300 = vmatpush1.bf16.msra.mxu0 0
    %301 = vmatprep.subr.bf16.mxu0 0
    %302 = vmatpush1.bf16.msra.mxu0 0
    %303 = vmatprep.subr.bf16.mxu0 0
    %304 = vmatpush1.bf16.msra.mxu0 0
    %305 = vmatprep.subr.bf16.mxu0 0
    %306 = vmatpush1.bf16.msra.mxu0 0
    %307 = vmatprep.subr.bf16.mxu0 0
    %308 = vmatpush1.bf16.msra.mxu0 %v295
    %309 = vmatprep.subr.bf16.mxu0 0
    %310 = vmatpush1.bf16.msra.mxu0 %v285
    %311 = vmatprep.subr.bf16.mxu0 0
    %312 = vmatpush1.bf16.msra.mxu0 %v284
    %313 = vmatprep.subr.bf16.mxu0 0
    %314 = vmatpush2.bf16.msra.mxu0 0
    %315 = vmatprep.subr.bf16.mxu0 0
    %316 = vmatpush2.bf16.msra.mxu0 0
    %317 = vmatprep.subr.bf16.mxu0 0
    %318 = vmatpush2.bf16.msra.mxu0 0
    %319 = vmatprep.subr.bf16.mxu0 0
    %320 = vmatpush2.bf16.msra.mxu0 0
    %321 = vmatprep.subr.bf16.mxu0 0
    %322 = vmatpush2.bf16.msra.mxu0 0
    %323 = vmatprep.subr.bf16.mxu0 0
    %324 = vmatpush2.bf16.msra.mxu0 0
    %325 = vmatprep.subr.bf16.mxu0 0
    %326 = vmatpush2.bf16.msra.mxu0 0
    %327 = vmatprep.subr.bf16.mxu0 0
    %328 = vmatpush2.bf16.msra.mxu0 0
    %329 = vmatprep.mubr.bf16.mxu0 0
    %330 = vmatmul.mubr.bf16.gmra.mxu0 %v291
    %v331 = vpop.f32.mrf.mxu0
    %v332 = vadd.f32 %v272, %v331
    %v333 = vpop.f32.mrf.mxu0
    %v334 = vpop.f32.mrf.mxu0
    %v335 = vpop.f32.mrf.mxu0
    %336 = vdwg.mxu0
    %v337 = vsub.f32 %v332, 0.5
    %v338 = vmul.f32 %v337, -10.0
    %v339 = vmul.f32 %v338, 1.442695
    %v340 = vpow.pop %v339
    %v341 = vadd.f32 %v340, 1.0
    %v342 = vrcp.pop %v341
    %v343 = vmul.f32 1.0, %v342
    %vm344 = vcmask 130048
    %345 = vst.msk [vmem:[#allocation6] sm:$0xff] %vm344, %v343
    %v346 = vld [vmem:[#allocation2] sm:$0xf]
    %v347 = vld [vmem:[#allocation2 + $0x4] sm:$0xf]
    %v348 = vld [vmem:[#allocation2 + $0x8] sm:$0xf]
    %v349 = vld [vmem:[#allocation2 + $0xc] sm:$0xf]
    %v350 = vld [vmem:[#allocation2 + $0x10] sm:$0xf]
    %v351 = vld [vmem:[#allocation2 + $0x14] sm:$0xf]
    %v352 = vld [vmem:[#allocation2 + $0x18] sm:$0xf]
    %v353 = vld [vmem:[#allocation2 + $0x1c] sm:$0xf]
    %v354 = vld [vmem:[#allocation2 + $0x20] sm:$0xf]
    %v355 = vld [vmem:[#allocation2 + $0x24] sm:$0xf]
    %v356 = vld [vmem:[#allocation2 + $0x28] sm:$0xf]
    %v357 = vld [vmem:[#allocation2 + $0x2c] sm:$0xf]
    %v358 = vld [vmem:[#allocation2 + $0x30] sm:$0xf]
    %v359 = vld [vmem:[#allocation2 + $0x34] sm:$0xf]
    %v360 = vld [vmem:[#allocation2 + $0x38] sm:$0xf]
    %v361 = vld [vmem:[#allocation2 + $0x3c] sm:$0xf]
    %v362 = vld [vmem:[%s8] sm:$0x1]
    %v363 = vlaneseq
    %v364 = vshrl.u32 %v363, 7
    %v365 = vsub.s32 0, %v364
    %v366 = vrot.slane %v362, %v365
    %v383 = vunpack.c.l.b16 %v346
    %v384 = vunpack.c.l.b16 %v347
    %v385 = vunpack.c.l.b16 %v348
    %v386 = vunpack.c.l.b16 %v349
    %v387 = vunpack.c.l.b16 %v350
    %v388 = vunpack.c.l.b16 %v351
    %v389 = vunpack.c.l.b16 %v352
    %v390 = vunpack.c.l.b16 %v353
    %v391 = vunpack.c.l.b16 %v354
    %v392 = vunpack.c.l.b16 %v355
    %v393 = vunpack.c.l.b16 %v356
    %v394 = vunpack.c.l.b16 %v357
    %v395 = vunpack.c.l.b16 %v358
    %v396 = vunpack.c.l.b16 %v359
    %v397 = vunpack.c.l.b16 %v360
    %v398 = vunpack.c.l.b16 %v361
    %v399 = vpack.c.b16 %v384, %v383
    %v400 = vpack.c.b16 %v386, %v385
    %v401 = vpack.c.b16 %v388, %v387
    %v402 = vpack.c.b16 %v390, %v389
    %v403 = vpack.c.b16 %v392, %v391
    %v404 = vpack.c.b16 %v394, %v393
    %v405 = vpack.c.b16 %v396, %v395
    %v406 = vpack.c.b16 %v398, %v397
    %415 = vmatprep.subr.bf16.mxu0 0
    %416 = vmatpush1.bf16.msra.mxu0 %v406
    %417 = vmatprep.subr.bf16.mxu0 0
    %418 = vmatpush1.bf16.msra.mxu0 %v405
    %419 = vmatprep.subr.bf16.mxu0 0
    %420 = vmatpush1.bf16.msra.mxu0 %v404
    %421 = vmatprep.subr.bf16.mxu0 0
    %422 = vmatpush1.bf16.msra.mxu0 %v403
    %423 = vmatprep.subr.bf16.mxu0 0
    %424 = vmatpush1.bf16.msra.mxu0 %v402
    %425 = vmatprep.subr.bf16.mxu0 0
    %426 = vmatpush1.bf16.msra.mxu0 %v401
    %427 = vmatprep.subr.bf16.mxu0 0
    %428 = vmatpush1.bf16.msra.mxu0 %v400
    %429 = vmatprep.subr.bf16.mxu0 0
    %430 = vmatpush1.bf16.msra.mxu0 %v399
    %431 = vmatprep.subr.bf16.mxu0 0
    %432 = vmatpush2.bf16.msra.mxu0 0
    %433 = vmatprep.subr.bf16.mxu0 0
    %434 = vmatpush2.bf16.msra.mxu0 0
    %435 = vmatprep.subr.bf16.mxu0 0
    %436 = vmatpush2.bf16.msra.mxu0 0
    %437 = vmatprep.subr.bf16.mxu0 0
    %438 = vmatpush2.bf16.msra.mxu0 0
    %439 = vmatprep.subr.bf16.mxu0 0
    %440 = vmatpush2.bf16.msra.mxu0 0
    %441 = vmatprep.subr.bf16.mxu0 0
    %442 = vmatpush2.bf16.msra.mxu0 0
    %443 = vmatprep.subr.bf16.mxu0 0
    %444 = vmatpush2.bf16.msra.mxu0 0
    %445 = vmatprep.subr.bf16.mxu0 0
    %446 = vmatpush2.bf16.msra.mxu0 0
    %447 = vmatprep.mubr.bf16.mxu0 0
    %448 = vmatmul.mubr.bf16.gmra.mxu0 %v55
    %v449 = vpop.f32.mrf.mxu0
    %v450 = vadd.f32 %v366, %v449
    %v451 = vpop.f32.mrf.mxu0
    %v452 = vpop.f32.mrf.mxu0
    %v453 = vpop.f32.mrf.mxu0
    %454 = vdwg.mxu0
    %v455 = vld [vmem:[%s9] sm:$0xff]
    %v456 = vld [vmem:[%s9 + $0x8] sm:$0xff]
    %v458 = vsel %vm344, %v343, 0
    %460 = vmatprep.subr.mxu0 0.0
    %461 = vmatpush1.msra.mxu0 0.0
    %462 = vmatprep.subr.mxu0 0.0
    %463 = vmatpush1.msra.mxu0 0.0
    %464 = vmatprep.subr.mxu0 0.0
    %465 = vmatpush1.msra.mxu0 0.0
    %466 = vmatprep.subr.mxu0 0.0
    %467 = vmatpush1.msra.mxu0 0.0
    %468 = vmatprep.subr.mxu0 0.0
    %469 = vmatpush1.msra.mxu0 0.0
    %470 = vmatprep.subr.mxu0 0.0
    %471 = vmatpush1.msra.mxu0 0.0
    %472 = vmatprep.subr.mxu0 0.0
    %473 = vmatpush1.msra.mxu0 0.0
    %474 = vmatprep.subr.mxu0 0.0
    %475 = vmatpush1.msra.mxu0 0.0
    %476 = vmatprep.subr.mxu0 0.0
    %477 = vmatpush1.msra.mxu0 0.0
    %478 = vmatprep.subr.mxu0 0.0
    %479 = vmatpush1.msra.mxu0 0.0
    %480 = vmatprep.subr.mxu0 0.0
    %481 = vmatpush1.msra.mxu0 0.0
    %482 = vmatprep.subr.mxu0 0.0
    %483 = vmatpush1.msra.mxu0 0.0
    %484 = vmatprep.subr.mxu0 0.0
    %485 = vmatpush1.msra.mxu0 0.0
    %486 = vmatprep.subr.mxu0 0.0
    %487 = vmatpush1.msra.mxu0 0.0
    %488 = vmatprep.subr.mxu0 0.0
    %489 = vmatpush1.msra.mxu0 %v456
    %490 = vmatprep.subr.mxu0 0.0
    %491 = vmatpush1.msra.mxu0 %v455
    %492 = vmatprep.subr.mxu0 0.0
    %493 = vmatpush2.msra.mxu0 0.0
    %494 = vmatprep.subr.mxu0 0.0
    %495 = vmatpush2.msra.mxu0 0.0
    %496 = vmatprep.subr.mxu0 0.0
    %497 = vmatpush2.msra.mxu0 0.0
    %498 = vmatprep.subr.mxu0 0.0
    %499 = vmatpush2.msra.mxu0 0.0
    %500 = vmatprep.subr.mxu0 0.0
    %501 = vmatpush2.msra.mxu0 0.0
    %502 = vmatprep.subr.mxu0 0.0
    %503 = vmatpush2.msra.mxu0 0.0
    %504 = vmatprep.subr.mxu0 0.0
    %505 = vmatpush2.msra.mxu0 0.0
    %506 = vmatprep.subr.mxu0 0.0
    %507 = vmatpush2.msra.mxu0 0.0
    %508 = vmatprep.subr.mxu0 0.0
    %509 = vmatpush2.msra.mxu0 0.0
    %510 = vmatprep.subr.mxu0 0.0
    %511 = vmatpush2.msra.mxu0 0.0
    %512 = vmatprep.subr.mxu0 0.0
    %513 = vmatpush2.msra.mxu0 0.0
    %514 = vmatprep.subr.mxu0 0.0
    %515 = vmatpush2.msra.mxu0 0.0
    %516 = vmatprep.subr.mxu0 0.0
    %517 = vmatpush2.msra.mxu0 0.0
    %518 = vmatprep.subr.mxu0 0.0
    %519 = vmatpush2.msra.mxu0 0.0
    %520 = vmatprep.subr.mxu0 0.0
    %521 = vmatpush2.msra.mxu0 0.0
    %522 = vmatprep.subr.mxu0 0.0
    %523 = vmatpush2.msra.mxu0 0.0
    %524 = vmatprep.mubr.f32.mxu0 0.0
    %525 = vmatmul.mubr.f32.gmra.mxu0 %v458
    %v526 = vpop.f32.mrf.mxu0
    %v527 = vadd.f32 0.0, %v526
    %v528 = vpop.f32.mrf.mxu0
    %529 = vdwg.mxu0
    %v530 = vmax.f32 %v450, 0.0
    %v531 = vmul.f32 %v527, %v530
    %v532 = vadd.f32 %v54, %v531
    %v533 = vpack.c.bf16 %v531, %v531
    %s534 = scalar_lea.vmem [#allocation2], 64
    %v535 = vld [vmem:[%s534] sm:$0xf]
    %v536 = vld [vmem:[%s534 + $0x4] sm:$0xf]
    %v537 = vld [vmem:[%s534 + $0x8] sm:$0xf]
    %v538 = vld [vmem:[%s534 + $0xc] sm:$0xf]
    %v539 = vld [vmem:[%s534 + $0x10] sm:$0xf]
    %v540 = vld [vmem:[%s534 + $0x14] sm:$0xf]
    %v541 = vld [vmem:[%s534 + $0x18] sm:$0xf]
    %v542 = vld [vmem:[%s534 + $0x1c] sm:$0xf]
    %v543 = vld [vmem:[%s534 + $0x20] sm:$0xf]
    %v544 = vld [vmem:[%s534 + $0x24] sm:$0xf]
    %v545 = vld [vmem:[%s534 + $0x28] sm:$0xf]
    %v546 = vld [vmem:[%s534 + $0x2c] sm:$0xf]
    %v547 = vld [vmem:[%s534 + $0x30] sm:$0xf]
    %v548 = vld [vmem:[%s534 + $0x34] sm:$0xf]
    %v549 = vld [vmem:[%s534 + $0x38] sm:$0xf]
    %v550 = vld [vmem:[%s534 + $0x3c] sm:$0xf]
    %v551 = vld [vmem:[%s8 + $0x1] sm:$0x1]
    %v552 = vlaneseq
    %v553 = vshrl.u32 %v552, 7
    %v554 = vsub.s32 0, %v553
    %v555 = vrot.slane %v551, %v554
    %v572 = vunpack.c.l.b16 %v535
    %v573 = vunpack.c.l.b16 %v536
    %v574 = vunpack.c.l.b16 %v537
    %v575 = vunpack.c.l.b16 %v538
    %v576 = vunpack.c.l.b16 %v539
    %v577 = vunpack.c.l.b16 %v540
    %v578 = vunpack.c.l.b16 %v541
    %v579 = vunpack.c.l.b16 %v542
    %v580 = vunpack.c.l.b16 %v543
    %v581 = vunpack.c.l.b16 %v544
    %v582 = vunpack.c.l.b16 %v545
    %v583 = vunpack.c.l.b16 %v546
    %v584 = vunpack.c.l.b16 %v547
    %v585 = vunpack.c.l.b16 %v548
    %v586 = vunpack.c.l.b16 %v549
    %v587 = vunpack.c.l.b16 %v550
    %v588 = vpack.c.b16 %v573, %v572
    %v589 = vpack.c.b16 %v575, %v574
    %v590 = vpack.c.b16 %v577, %v576
    %v591 = vpack.c.b16 %v579, %v578
    %v592 = vpack.c.b16 %v581, %v580
    %v593 = vpack.c.b16 %v583, %v582
    %v594 = vpack.c.b16 %v585, %v584
    %v595 = vpack.c.b16 %v587, %v586
    %604 = vmatprep.subr.bf16.mxu0 0
    %605 = vmatpush1.bf16.msra.mxu0 %v595
    %606 = vmatprep.subr.bf16.mxu0 0
    %607 = vmatpush1.bf16.msra.mxu0 %v594
    %608 = vmatprep.subr.bf16.mxu0 0
    %609 = vmatpush1.bf16.msra.mxu0 %v593
    %610 = vmatprep.subr.bf16.mxu0 0
    %611 = vmatpush1.bf16.msra.mxu0 %v592
    %612 = vmatprep.subr.bf16.mxu0 0
    %613 = vmatpush1.bf16.msra.mxu0 %v591
    %614 = vmatprep.subr.bf16.mxu0 0
    %615 = vmatpush1.bf16.msra.mxu0 %v590
    %616 = vmatprep.subr.bf16.mxu0 0
    %617 = vmatpush1.bf16.msra.mxu0 %v589
    %618 = vmatprep.subr.bf16.mxu0 0
    %619 = vmatpush1.bf16.msra.mxu0 %v588
    %620 = vmatprep.subr.bf16.mxu0 0
    %621 = vmatpush2.bf16.msra.mxu0 0
    %622 = vmatprep.subr.bf16.mxu0 0
    %623 = vmatpush2.bf16.msra.mxu0 0
    %624 = vmatprep.subr.bf16.mxu0 0
    %625 = vmatpush2.bf16.msra.mxu0 0
    %626 = vmatprep.subr.bf16.mxu0 0
    %627 = vmatpush2.bf16.msra.mxu0 0
    %628 = vmatprep.subr.bf16.mxu0 0
    %629 = vmatpush2.bf16.msra.mxu0 0
    %630 = vmatprep.subr.bf16.mxu0 0
    %631 = vmatpush2.bf16.msra.mxu0 0
    %632 = vmatprep.subr.bf16.mxu0 0
    %633 = vmatpush2.bf16.msra.mxu0 0
    %634 = vmatprep.subr.bf16.mxu0 0
    %635 = vmatpush2.bf16.msra.mxu0 0
    %636 = vmatprep.mubr.bf16.mxu0 0
    %637 = vmatmul.mubr.bf16.gmra.mxu0 %v533
    %v638 = vpop.f32.mrf.mxu0
    %v639 = vadd.f32 %v555, %v638
    %v640 = vpop.f32.mrf.mxu0
    %v641 = vpop.f32.mrf.mxu0
    %v642 = vpop.f32.mrf.mxu0
    %643 = vdwg.mxu0
    %s644 = scalar_lea.vmem %s9, 16
    %v645 = vld [vmem:[%s644] sm:$0xff]
    %v646 = vld [vmem:[%s644 + $0x8] sm:$0xff]
    %647 = vmatprep.subr.mxu0 0.0
    %648 = vmatpush1.msra.mxu0 0.0
    %649 = vmatprep.subr.mxu0 0.0
    %650 = vmatpush1.msra.mxu0 0.0
    %651 = vmatprep.subr.mxu0 0.0
    %652 = vmatpush1.msra.mxu0 0.0
    %653 = vmatprep.subr.mxu0 0.0
    %654 = vmatpush1.msra.mxu0 0.0
    %655 = vmatprep.subr.mxu0 0.0
    %656 = vmatpush1.msra.mxu0 0.0
    %657 = vmatprep.subr.mxu0 0.0
    %658 = vmatpush1.msra.mxu0 0.0
    %659 = vmatprep.subr.mxu0 0.0
    %660 = vmatpush1.msra.mxu0 0.0
    %661 = vmatprep.subr.mxu0 0.0
    %662 = vmatpush1.msra.mxu0 0.0
    %663 = vmatprep.subr.mxu0 0.0
    %664 = vmatpush1.msra.mxu0 0.0
    %665 = vmatprep.subr.mxu0 0.0
    %666 = vmatpush1.msra.mxu0 0.0
    %667 = vmatprep.subr.mxu0 0.0
    %668 = vmatpush1.msra.mxu0 0.0
    %669 = vmatprep.subr.mxu0 0.0
    %670 = vmatpush1.msra.mxu0 0.0
    %671 = vmatprep.subr.mxu0 0.0
    %672 = vmatpush1.msra.mxu0 0.0
    %673 = vmatprep.subr.mxu0 0.0
    %674 = vmatpush1.msra.mxu0 0.0
    %675 = vmatprep.subr.mxu0 0.0
    %676 = vmatpush1.msra.mxu0 %v646
    %677 = vmatprep.subr.mxu0 0.0
    %678 = vmatpush1.msra.mxu0 %v645
    %679 = vmatprep.subr.mxu0 0.0
    %680 = vmatpush2.msra.mxu0 0.0
    %681 = vmatprep.subr.mxu0 0.0
    %682 = vmatpush2.msra.mxu0 0.0
    %683 = vmatprep.subr.mxu0 0.0
    %684 = vmatpush2.msra.mxu0 0.0
    %685 = vmatprep.subr.mxu0 0.0
    %686 = vmatpush2.msra.mxu0 0.0
    %687 = vmatprep.subr.mxu0 0.0
    %688 = vmatpush2.msra.mxu0 0.0
    %689 = vmatprep.subr.mxu0 0.0
    %690 = vmatpush2.msra.mxu0 0.0
    %691 = vmatprep.subr.mxu0 0.0
    %692 = vmatpush2.msra.mxu0 0.0
    %693 = vmatprep.subr.mxu0 0.0
    %694 = vmatpush2.msra.mxu0 0.0
    %695 = vmatprep.subr.mxu0 0.0
    %696 = vmatpush2.msra.mxu0 0.0
    %697 = vmatprep.subr.mxu0 0.0
    %698 = vmatpush2.msra.mxu0 0.0
    %699 = vmatprep.subr.mxu0 0.0
    %700 = vmatpush2.msra.mxu0 0.0
    %701 = vmatprep.subr.mxu0 0.0
    %702 = vmatpush2.msra.mxu0 0.0
    %703 = vmatprep.subr.mxu0 0.0
    %704 = vmatpush2.msra.mxu0 0.0
    %705 = vmatprep.subr.mxu0 0.0
    %706 = vmatpush2.msra.mxu0 0.0
    %707 = vmatprep.subr.mxu0 0.0
    %708 = vmatpush2.msra.mxu0 0.0
    %709 = vmatprep.subr.mxu0 0.0
    %710 = vmatpush2.msra.mxu0 0.0
    %711 = vmatprep.mubr.f32.mxu0 0.0
    %712 = vmatmul.mubr.f32.gmra.mxu0 %v458
    %v713 = vpop.f32.mrf.mxu0
    %v714 = vadd.f32 0.0, %v713
    %v715 = vpop.f32.mrf.mxu0
    %716 = vdwg.mxu0
    %v717 = vmax.f32 %v639, 0.0
    %v718 = vmul.f32 %v714, %v717
    %v719 = vadd.f32 %v532, %v718
    %v720 = vpack.c.bf16 %v718, %v718
    %s721 = scalar_lea.vmem [#allocation2], 128
    %v722 = vld [vmem:[%s721] sm:$0xf]
    %v723 = vld [vmem:[%s721 + $0x4] sm:$0xf]
    %v724 = vld [vmem:[%s721 + $0x8] sm:$0xf]
    %v725 = vld [vmem:[%s721 + $0xc] sm:$0xf]
    %v726 = vld [vmem:[%s721 + $0x10] sm:$0xf]
    %v727 = vld [vmem:[%s721 + $0x14] sm:$0xf]
    %v728 = vld [vmem:[%s721 + $0x18] sm:$0xf]
    %v729 = vld [vmem:[%s721 + $0x1c] sm:$0xf]
    %v730 = vld [vmem:[%s721 + $0x20] sm:$0xf]
    %v731 = vld [vmem:[%s721 + $0x24] sm:$0xf]
    %v732 = vld [vmem:[%s721 + $0x28] sm:$0xf]
    %v733 = vld [vmem:[%s721 + $0x2c] sm:$0xf]
    %v734 = vld [vmem:[%s721 + $0x30] sm:$0xf]
    %v735 = vld [vmem:[%s721 + $0x34] sm:$0xf]
    %v736 = vld [vmem:[%s721 + $0x38] sm:$0xf]
    %v737 = vld [vmem:[%s721 + $0x3c] sm:$0xf]
    %v738 = vld [vmem:[%s8 + $0x2] sm:$0x1]
    %v739 = vlaneseq
    %v740 = vshrl.u32 %v739, 7
    %v741 = vsub.s32 0, %v740
    %v742 = vrot.slane %v738, %v741
    %v759 = vunpack.c.l.b16 %v722
    %v760 = vunpack.c.l.b16 %v723
    %v761 = vunpack.c.l.b16 %v724
    %v762 = vunpack.c.l.b16 %v725
    %v763 = vunpack.c.l.b16 %v726
    %v764 = vunpack.c.l.b16 %v727
    %v765 = vunpack.c.l.b16 %v728
    %v766 = vunpack.c.l.b16 %v729
    %v767 = vunpack.c.l.b16 %v730
    %v768 = vunpack.c.l.b16 %v731
    %v769 = vunpack.c.l.b16 %v732
    %v770 = vunpack.c.l.b16 %v733
    %v771 = vunpack.c.l.b16 %v734
    %v772 = vunpack.c.l.b16 %v735
    %v773 = vunpack.c.l.b16 %v736
    %v774 = vunpack.c.l.b16 %v737
    %v775 = vpack.c.b16 %v760, %v759
    %v776 = vpack.c.b16 %v762, %v761
    %v777 = vpack.c.b16 %v764, %v763
    %v778 = vpack.c.b16 %v766, %v765
    %v779 = vpack.c.b16 %v768, %v767
    %v780 = vpack.c.b16 %v770, %v769
    %v781 = vpack.c.b16 %v772, %v771
    %v782 = vpack.c.b16 %v774, %v773
    %791 = vmatprep.subr.bf16.mxu0 0
    %792 = vmatpush1.bf16.msra.mxu0 %v782
    %793 = vmatprep.subr.bf16.mxu0 0
    %794 = vmatpush1.bf16.msra.mxu0 %v781
    %795 = vmatprep.subr.bf16.mxu0 0
    %796 = vmatpush1.bf16.msra.mxu0 %v780
    %797 = vmatprep.subr.bf16.mxu0 0
    %798 = vmatpush1.bf16.msra.mxu0 %v779
    %799 = vmatprep.subr.bf16.mxu0 0
    %800 = vmatpush1.bf16.msra.mxu0 %v778
    %801 = vmatprep.subr.bf16.mxu0 0
    %802 = vmatpush1.bf16.msra.mxu0 %v777
    %803 = vmatprep.subr.bf16.mxu0 0
    %804 = vmatpush1.bf16.msra.mxu0 %v776
    %805 = vmatprep.subr.bf16.mxu0 0
    %806 = vmatpush1.bf16.msra.mxu0 %v775
    %807 = vmatprep.subr.bf16.mxu0 0
    %808 = vmatpush2.bf16.msra.mxu0 0
    %809 = vmatprep.subr.bf16.mxu0 0
    %810 = vmatpush2.bf16.msra.mxu0 0
    %811 = vmatprep.subr.bf16.mxu0 0
    %812 = vmatpush2.bf16.msra.mxu0 0
    %813 = vmatprep.subr.bf16.mxu0 0
    %814 = vmatpush2.bf16.msra.mxu0 0
    %815 = vmatprep.subr.bf16.mxu0 0
    %816 = vmatpush2.bf16.msra.mxu0 0
    %817 = vmatprep.subr.bf16.mxu0 0
    %818 = vmatpush2.bf16.msra.mxu0 0
    %819 = vmatprep.subr.bf16.mxu0 0
    %820 = vmatpush2.bf16.msra.mxu0 0
    %821 = vmatprep.subr.bf16.mxu0 0
    %822 = vmatpush2.bf16.msra.mxu0 0
    %823 = vmatprep.mubr.bf16.mxu0 0
    %824 = vmatmul.mubr.bf16.gmra.mxu0 %v720
    %v825 = vpop.f32.mrf.mxu0
    %v826 = vadd.f32 %v742, %v825
    %v827 = vpop.f32.mrf.mxu0
    %v828 = vpop.f32.mrf.mxu0
    %v829 = vpop.f32.mrf.mxu0
    %830 = vdwg.mxu0
    %s831 = scalar_lea.vmem %s9, 32
    %v832 = vld [vmem:[%s831] sm:$0xff]
    %v833 = vld [vmem:[%s831 + $0x8] sm:$0xff]
    %834 = vmatprep.subr.mxu0 0.0
    %835 = vmatpush1.msra.mxu0 0.0
    %836 = vmatprep.subr.mxu0 0.0
    %837 = vmatpush1.msra.mxu0 0.0
    %838 = vmatprep.subr.mxu0 0.0
    %839 = vmatpush1.msra.mxu0 0.0
    %840 = vmatprep.subr.mxu0 0.0
    %841 = vmatpush1.msra.mxu0 0.0
    %842 = vmatprep.subr.mxu0 0.0
    %843 = vmatpush1.msra.mxu0 0.0
    %844 = vmatprep.subr.mxu0 0.0
    %845 = vmatpush1.msra.mxu0 0.0
    %846 = vmatprep.subr.mxu0 0.0
    %847 = vmatpush1.msra.mxu0 0.0
    %848 = vmatprep.subr.mxu0 0.0
    %849 = vmatpush1.msra.mxu0 0.0
    %850 = vmatprep.subr.mxu0 0.0
    %851 = vmatpush1.msra.mxu0 0.0
    %852 = vmatprep.subr.mxu0 0.0
    %853 = vmatpush1.msra.mxu0 0.0
    %854 = vmatprep.subr.mxu0 0.0
    %855 = vmatpush1.msra.mxu0 0.0
    %856 = vmatprep.subr.mxu0 0.0
    %857 = vmatpush1.msra.mxu0 0.0
    %858 = vmatprep.subr.mxu0 0.0
    %859 = vmatpush1.msra.mxu0 0.0
    %860 = vmatprep.subr.mxu0 0.0
    %861 = vmatpush1.msra.mxu0 0.0
    %862 = vmatprep.subr.mxu0 0.0
    %863 = vmatpush1.msra.mxu0 %v833
    %864 = vmatprep.subr.mxu0 0.0
    %865 = vmatpush1.msra.mxu0 %v832
    %866 = vmatprep.subr.mxu0 0.0
    %867 = vmatpush2.msra.mxu0 0.0
    %868 = vmatprep.subr.mxu0 0.0
    %869 = vmatpush2.msra.mxu0 0.0
    %870 = vmatprep.subr.mxu0 0.0
    %871 = vmatpush2.msra.mxu0 0.0
    %872 = vmatprep.subr.mxu0 0.0
    %873 = vmatpush2.msra.mxu0 0.0
    %874 = vmatprep.subr.mxu0 0.0
    %875 = vmatpush2.msra.mxu0 0.0
    %876 = vmatprep.subr.mxu0 0.0
    %877 = vmatpush2.msra.mxu0 0.0
    %878 = vmatprep.subr.mxu0 0.0
    %879 = vmatpush2.msra.mxu0 0.0
    %880 = vmatprep.subr.mxu0 0.0
    %881 = vmatpush2.msra.mxu0 0.0
    %882 = vmatprep.subr.mxu0 0.0
    %883 = vmatpush2.msra.mxu0 0.0
    %884 = vmatprep.subr.mxu0 0.0
    %885 = vmatpush2.msra.mxu0 0.0
    %886 = vmatprep.subr.mxu0 0.0
    %887 = vmatpush2.msra.mxu0 0.0
    %888 = vmatprep.subr.mxu0 0.0
    %889 = vmatpush2.msra.mxu0 0.0
    %890 = vmatprep.subr.mxu0 0.0
    %891 = vmatpush2.msra.mxu0 0.0
    %892 = vmatprep.subr.mxu0 0.0
    %893 = vmatpush2.msra.mxu0 0.0
    %894 = vmatprep.subr.mxu0 0.0
    %895 = vmatpush2.msra.mxu0 0.0
    %896 = vmatprep.subr.mxu0 0.0
    %897 = vmatpush2.msra.mxu0 0.0
    %898 = vmatprep.mubr.f32.mxu0 0.0
    %899 = vmatmul.mubr.f32.gmra.mxu0 %v458
    %v900 = vpop.f32.mrf.mxu0
    %v901 = vadd.f32 0.0, %v900
    %v902 = vpop.f32.mrf.mxu0
    %903 = vdwg.mxu0
    %v904 = vmax.f32 %v826, 0.0
    %v905 = vmul.f32 %v901, %v904
    %v906 = vadd.f32 %v719, %v905
    %v907 = vpack.c.bf16 %v905, %v905
    %s908 = scalar_lea.vmem [#allocation2], 192
    %v909 = vld [vmem:[%s908] sm:$0xf]
    %v910 = vld [vmem:[%s908 + $0x4] sm:$0xf]
    %v911 = vld [vmem:[%s908 + $0x8] sm:$0xf]
    %v912 = vld [vmem:[%s908 + $0xc] sm:$0xf]
    %v913 = vld [vmem:[%s908 + $0x10] sm:$0xf]
    %v914 = vld [vmem:[%s908 + $0x14] sm:$0xf]
    %v915 = vld [vmem:[%s908 + $0x18] sm:$0xf]
    %v916 = vld [vmem:[%s908 + $0x1c] sm:$0xf]
    %v917 = vld [vmem:[%s908 + $0x20] sm:$0xf]
    %v918 = vld [vmem:[%s908 + $0x24] sm:$0xf]
    %v919 = vld [vmem:[%s908 + $0x28] sm:$0xf]
    %v920 = vld [vmem:[%s908 + $0x2c] sm:$0xf]
    %v921 = vld [vmem:[%s908 + $0x30] sm:$0xf]
    %v922 = vld [vmem:[%s908 + $0x34] sm:$0xf]
    %v923 = vld [vmem:[%s908 + $0x38] sm:$0xf]
    %v924 = vld [vmem:[%s908 + $0x3c] sm:$0xf]
    %v925 = vld [vmem:[%s8 + $0x3] sm:$0x1]
    %v926 = vlaneseq
    %v927 = vshrl.u32 %v926, 7
    %v928 = vsub.s32 0, %v927
    %v929 = vrot.slane %v925, %v928
    %v946 = vunpack.c.l.b16 %v909
    %v947 = vunpack.c.l.b16 %v910
    %v948 = vunpack.c.l.b16 %v911
    %v949 = vunpack.c.l.b16 %v912
    %v950 = vunpack.c.l.b16 %v913
    %v951 = vunpack.c.l.b16 %v914
    %v952 = vunpack.c.l.b16 %v915
    %v953 = vunpack.c.l.b16 %v916
    %v954 = vunpack.c.l.b16 %v917
    %v955 = vunpack.c.l.b16 %v918
    %v956 = vunpack.c.l.b16 %v919
    %v957 = vunpack.c.l.b16 %v920
    %v958 = vunpack.c.l.b16 %v921
    %v959 = vunpack.c.l.b16 %v922
    %v960 = vunpack.c.l.b16 %v923
    %v961 = vunpack.c.l.b16 %v924
    %v962 = vpack.c.b16 %v947, %v946
    %v963 = vpack.c.b16 %v949, %v948
    %v964 = vpack.c.b16 %v951, %v950
    %v965 = vpack.c.b16 %v953, %v952
    %v966 = vpack.c.b16 %v955, %v954
    %v967 = vpack.c.b16 %v957, %v956
    %v968 = vpack.c.b16 %v959, %v958
    %v969 = vpack.c.b16 %v961, %v960
    %978 = vmatprep.subr.bf16.mxu0 0
    %979 = vmatpush1.bf16.msra.mxu0 %v969
    %980 = vmatprep.subr.bf16.mxu0 0
    %981 = vmatpush1.bf16.msra.mxu0 %v968
    %982 = vmatprep.subr.bf16.mxu0 0
    %983 = vmatpush1.bf16.msra.mxu0 %v967
    %984 = vmatprep.subr.bf16.mxu0 0
    %985 = vmatpush1.bf16.msra.mxu0 %v966
    %986 = vmatprep.subr.bf16.mxu0 0
    %987 = vmatpush1.bf16.msra.mxu0 %v965
    %988 = vmatprep.subr.bf16.mxu0 0
    %989 = vmatpush1.bf16.msra.mxu0 %v964
    %990 = vmatprep.subr.bf16.mxu0 0
    %991 = vmatpush1.bf16.msra.mxu0 %v963
    %992 = vmatprep.subr.bf16.mxu0 0
    %993 = vmatpush1.bf16.msra.mxu0 %v962
    %994 = vmatprep.subr.bf16.mxu0 0
    %995 = vmatpush2.bf16.msra.mxu0 0
    %996 = vmatprep.subr.bf16.mxu0 0
    %997 = vmatpush2.bf16.msra.mxu0 0
    %998 = vmatprep.subr.bf16.mxu0 0
    %999 = vmatpush2.bf16.msra.mxu0 0
    %1000 = vmatprep.subr.bf16.mxu0 0
    %1001 = vmatpush2.bf16.msra.mxu0 0
    %1002 = vmatprep.subr.bf16.mxu0 0
    %1003 = vmatpush2.bf16.msra.mxu0 0
    %1004 = vmatprep.subr.bf16.mxu0 0
    %1005 = vmatpush2.bf16.msra.mxu0 0
    %1006 = vmatprep.subr.bf16.mxu0 0
    %1007 = vmatpush2.bf16.msra.mxu0 0
    %1008 = vmatprep.subr.bf16.mxu0 0
    %1009 = vmatpush2.bf16.msra.mxu0 0
    %1010 = vmatprep.mubr.bf16.mxu0 0
    %1011 = vmatmul.mubr.bf16.gmra.mxu0 %v907
    %v1012 = vpop.f32.mrf.mxu0
    %v1013 = vadd.f32 %v929, %v1012
    %v1014 = vpop.f32.mrf.mxu0
    %v1015 = vpop.f32.mrf.mxu0
    %v1016 = vpop.f32.mrf.mxu0
    %1017 = vdwg.mxu0
    %s1018 = scalar_lea.vmem %s9, 48
    %v1019 = vld [vmem:[%s1018] sm:$0xff]
    %v1020 = vld [vmem:[%s1018 + $0x8] sm:$0xff]
    %1021 = vmatprep.subr.mxu0 0.0
    %1022 = vmatpush1.msra.mxu0 0.0
    %1023 = vmatprep.subr.mxu0 0.0
    %1024 = vmatpush1.msra.mxu0 0.0
    %1025 = vmatprep.subr.mxu0 0.0
    %1026 = vmatpush1.msra.mxu0 0.0
    %1027 = vmatprep.subr.mxu0 0.0
    %1028 = vmatpush1.msra.mxu0 0.0
    %1029 = vmatprep.subr.mxu0 0.0
    %1030 = vmatpush1.msra.mxu0 0.0
    %1031 = vmatprep.subr.mxu0 0.0
    %1032 = vmatpush1.msra.mxu0 0.0
    %1033 = vmatprep.subr.mxu0 0.0
    %1034 = vmatpush1.msra.mxu0 0.0
    %1035 = vmatprep.subr.mxu0 0.0
    %1036 = vmatpush1.msra.mxu0 0.0
    %1037 = vmatprep.subr.mxu0 0.0
    %1038 = vmatpush1.msra.mxu0 0.0
    %1039 = vmatprep.subr.mxu0 0.0
    %1040 = vmatpush1.msra.mxu0 0.0
    %1041 = vmatprep.subr.mxu0 0.0
    %1042 = vmatpush1.msra.mxu0 0.0
    %1043 = vmatprep.subr.mxu0 0.0
    %1044 = vmatpush1.msra.mxu0 0.0
    %1045 = vmatprep.subr.mxu0 0.0
    %1046 = vmatpush1.msra.mxu0 0.0
    %1047 = vmatprep.subr.mxu0 0.0
    %1048 = vmatpush1.msra.mxu0 0.0
    %1049 = vmatprep.subr.mxu0 0.0
    %1050 = vmatpush1.msra.mxu0 %v1020
    %1051 = vmatprep.subr.mxu0 0.0
    %1052 = vmatpush1.msra.mxu0 %v1019
    %1053 = vmatprep.subr.mxu0 0.0
    %1054 = vmatpush2.msra.mxu0 0.0
    %1055 = vmatprep.subr.mxu0 0.0
    %1056 = vmatpush2.msra.mxu0 0.0
    %1057 = vmatprep.subr.mxu0 0.0
    %1058 = vmatpush2.msra.mxu0 0.0
    %1059 = vmatprep.subr.mxu0 0.0
    %1060 = vmatpush2.msra.mxu0 0.0
    %1061 = vmatprep.subr.mxu0 0.0
    %1062 = vmatpush2.msra.mxu0 0.0
    %1063 = vmatprep.subr.mxu0 0.0
    %1064 = vmatpush2.msra.mxu0 0.0
    %1065 = vmatprep.subr.mxu0 0.0
    %1066 = vmatpush2.msra.mxu0 0.0
    %1067 = vmatprep.subr.mxu0 0.0
    %1068 = vmatpush2.msra.mxu0 0.0
    %1069 = vmatprep.subr.mxu0 0.0
    %1070 = vmatpush2.msra.mxu0 0.0
    %1071 = vmatprep.subr.mxu0 0.0
    %1072 = vmatpush2.msra.mxu0 0.0
    %1073 = vmatprep.subr.mxu0 0.0
    %1074 = vmatpush2.msra.mxu0 0.0
    %1075 = vmatprep.subr.mxu0 0.0
    %1076 = vmatpush2.msra.mxu0 0.0
    %1077 = vmatprep.subr.mxu0 0.0
    %1078 = vmatpush2.msra.mxu0 0.0
    %1079 = vmatprep.subr.mxu0 0.0
    %1080 = vmatpush2.msra.mxu0 0.0
    %1081 = vmatprep.subr.mxu0 0.0
    %1082 = vmatpush2.msra.mxu0 0.0
    %1083 = vmatprep.subr.mxu0 0.0
    %1084 = vmatpush2.msra.mxu0 0.0
    %1085 = vmatprep.mubr.f32.mxu0 0.0
    %1086 = vmatmul.mubr.f32.gmra.mxu0 %v458
    %v1087 = vpop.f32.mrf.mxu0
    %v1088 = vadd.f32 0.0, %v1087
    %v1089 = vpop.f32.mrf.mxu0
    %1090 = vdwg.mxu0
    %v1091 = vmax.f32 %v1013, 0.0
    %v1092 = vmul.f32 %v1088, %v1091
    %v1093 = vadd.f32 %v906, %v1092
    %1094 = vst [vmem:[#allocation5] sm:$0xff] %v1093
    // Predicated region
    $region46: #{tpu_custom_call.1} parent=1 // pred_check
      _
    $region47: #{tpu_custom_call.1} parent=1 // pred_check_branch
      %1096 = sbr.rel (0) target = $region49
    $region48: #{tpu_custom_call.1} parent=1 // pred_region
      %s1098 = ssub.s32 128, 128
      %1099 = vsyncadd [#allocation4], %s1098
      %s1101 = sshll.u32 [#allocation5], 4
      %s1102 = int_to_ptr.vmem [resolvable:$true] %s1101
      %1104 = dma.vmem_to_hbm [thread:$0]  %s1102, 128, %s10, [#allocation4]
    $region49: #{tpu_custom_call.1} parent=1 // pred_fallthru
      _
    // Predicated region
    $region50: #{tpu_custom_call.1} parent=1 // pred_check
      _
    $region51: #{tpu_custom_call.1} parent=1 // pred_check_branch
      %1106 = sbr.rel (0) target = $region53
    $region52: #{tpu_custom_call.1} parent=1 // pred_region
      %s1108 = ssub.s32 128, 128
      %1109 = vsyncadd [#allocation7], %s1108
      %s1111 = sshll.u32 [#allocation6], 4
      %s1112 = int_to_ptr.vmem [resolvable:$true] %s1111
      %1114 = dma.vmem_to_hbm [thread:$0]  %s1112, 128, %s11, [#allocation7]
    $region53: #{tpu_custom_call.1} parent=1 // pred_fallthru
      _
    // Predicated region
    $region54: #{tpu_custom_call.1} parent=1 // pred_check
      _
    $region55: #{tpu_custom_call.1} parent=1 // pred_check_branch
      %1116 = sbr.rel (0) target = $region57
    $region56: #{tpu_custom_call.1} parent=1 // pred_region
      %1117 = dma.done [#allocation4], 128
    $region57: #{tpu_custom_call.1} parent=1 // pred_fallthru
      _
    // Predicated region
    $region58: #{tpu_custom_call.1} parent=1 // pred_check
      _
    $region59: #{tpu_custom_call.1} parent=1 // pred_check_branch
      %1119 = sbr.rel (0) target = $region61
    $region60: #{tpu_custom_call.1} parent=1 // pred_region
      %1120 = dma.done [#allocation7], 128
    $region61: #{tpu_custom_call.1} parent=1 // pred_fallthru
      _
    %1121 = vsyncpa [#allocation3], 1
    %1122 = vsyncpa [#allocation4], 1
    %1123 = vsyncpa [#allocation7], 1

</llo_original>
